<compile_context>
chip_gen: v7x
topology: tpu7x:2x2x1
jax: 0.10.0
libtpu: 0.0.40
codegen_flags: <defaults>
</compile_context>

<pallas_src>
import functools

import jax
import jax.numpy as jnp
from jax.experimental import pallas as pl
from jax.experimental.pallas import tpu as pltpu

KH = 3  # 3x3 convolutions


# ----------------------------------------------------------------------------
# fused BasicBlock kernel factory (all shape/config args are static Python)
# ----------------------------------------------------------------------------
def _make_block_kernel(H, W, Cin, Cmid, Cout, stride, has_shortcut, b_blk):
    Ho = (H + 2 - KH) // stride + 1
    Wo = (W + 2 - KH) // stride + 1

    def kernel(x_ref, w1_ref, s1_ref, t1_ref, w2_ref, s2_ref, t2_ref, out_ref):
        x = x_ref[...]                                  # (B, H+2, W*Cin) bf16

        # ---- conv1 + bn1 + relu (and the fused 1x1-conv+bn shortcut) ------
        # The three kh row-windows are lane-concatenated so the conv is ONE
        # (B*Ho, 3*W*Cin) x (3*W*Cin, Wo*(Cmid[+Cout])) MXU matmul.
        rows = [x[:, kh:kh + stride * (Ho - 1) + 1:stride, :]
                for kh in range(KH)]                    # each (B, Ho, W*Cin)
        lhs1 = jnp.concatenate(rows, axis=-1).reshape(b_blk * Ho, KH * W * Cin)
        big = jnp.dot(lhs1, w1_ref[...], preferred_element_type=jnp.float32)
        big = big * s1_ref[...] + t1_ref[...]           # folded BN affine(s)
        out1 = jnp.maximum(big[:, :Wo * Cmid], 0.0)     # conv1 + bn1 + relu
        if has_shortcut:
            sc = big[:, Wo * Cmid:]                     # 1x1 conv + bn
        else:                                           # identity shortcut
            sc = rows[1].reshape(b_blk * Ho, W * Cin).astype(jnp.float32)

        # ---- conv2 + bn2 + residual add + relu -----------------------------
        # conv2's H padding is built in-register (per-image row shift + zero
        # row): no VMEM scratch, no scratch zeroing, no misaligned stores.
        o3 = out1.reshape(b_blk, Ho, Wo * Cmid).astype(jnp.bfloat16)
        zrow = jnp.zeros((b_blk, 1, Wo * Cmid), jnp.bfloat16)
        dn = jnp.concatenate([zrow, o3[:, :Ho - 1, :]], axis=1)   # kh = 0
        up = jnp.concatenate([o3[:, 1:, :], zrow], axis=1)        # kh = 2
        lhs2 = jnp.concatenate([dn, o3, up], axis=-1)
        lhs2 = lhs2.reshape(b_blk * Ho, KH * Wo * Cmid)
        acc2 = jnp.dot(lhs2, w2_ref[...], preferred_element_type=jnp.float32)
        out2 = jnp.maximum(acc2 * s2_ref[...] + t2_ref[...] + sc, 0.0)
        out_ref[...] = out2.reshape(b_blk, Ho, Wo * Cout).astype(out_ref.dtype)

    return kernel


# ----------------------------------------------------------------------------
# weight / BN packing helpers (run in the JAX glue, outside the kernel)
# ----------------------------------------------------------------------------
def _band_weights(w_oihw, W_in, Wo, stride, pad):
    """Scatter OIHW conv taps into (kh, W_in*Cin, Wo*Cout) block-banded bf16
    matrices so each row offset kh of the conv is a plain matmul.  Out-of-range
    taps (W zero padding) simply get a zero band."""
    cout, cin, kh_w, kw_w = w_oihw.shape
    w = jnp.transpose(w_oihw, (2, 3, 1, 0)).astype(jnp.float32)  # (kh,kw,ci,co)
    wi = jnp.arange(W_in)[None, :, None]
    wo = jnp.arange(Wo)[None, None, :]
    kw = jnp.arange(kw_w)[:, None, None]
    sel = (wi == wo * stride + kw - pad).astype(jnp.float32)     # (kw,W_in,Wo)
    band = jnp.einsum("kab,hkio->haibo", sel, w)    # (kh, W_in, Cin, Wo, Cout)
    return band.reshape(kh_w, W_in * cin, Wo * cout).astype(jnp.bfloat16)


def _tile_bn(bn, Wo):
    """Tile folded-BN per-channel scale/bias along the packed W*C lane axis."""
    scale, bias = bn
    s = jnp.tile(scale.astype(jnp.float32), (Wo,)).reshape(1, -1)
    t = jnp.tile(bias.astype(jnp.float32), (Wo,)).reshape(1, -1)
    return s, t


def _pick_batch_block(N, Ho, target_rows=128):
    """Largest divisor of N such that B_blk*Ho stays near the 128-row MXU
    sweet spot (keeps the grid >= 2 parallel steps for v7x when N allows)."""
    cap = max(1, target_rows // max(Ho, 1))
    best = 1
    for d in range(1, min(N, cap) + 1):
        if N % d == 0:
            best = d
    return best


# ----------------------------------------------------------------------------
# BasicBlock forward (one pallas_call, grid over batch blocks)
# ----------------------------------------------------------------------------
def basic_block_forward(x_nchw, params, *, stride):
    N, Cin, H, W = x_nchw.shape
    Cmid = params["w1"].shape[0]
    Cout = params["w2"].shape[0]
    has_shortcut = "ws" in params          # pytree structure => static in jit

    Ho = (H + 2 - KH) // stride + 1
    Wo = (W + 2 - KH) // stride + 1
    b_blk = _pick_batch_block(N, Ho)

    # NCHW -> lane-packed (N, H, W*Cin), H-padded by 1 for conv1, bf16 operand.
    x = jnp.transpose(x_nchw, (0, 2, 3, 1)).reshape(N, H, W * Cin)
    xp = jnp.pad(x, ((0, 0), (1, 1), (0, 0))).astype(jnp.bfloat16)

    # K-stacked banded weights: the KH=3 bands become one (3*W*Cin, cols) mat.
    band1 = _band_weights(params["w1"], W, Wo, stride, pad=1)
    w1 = band1.reshape(KH * W * Cin, Wo * Cmid)
    band2 = _band_weights(params["w2"], Wo, Wo, 1, pad=1)
    w2 = band2.reshape(KH * Wo * Cmid, Wo * Cout)
    s1, t1 = _tile_bn(params["bn1"], Wo)
    s2, t2 = _tile_bn(params["bn2"], Wo)

    if has_shortcut:
        # Fuse the 1x1-conv+bn shortcut into conv1's matmul as extra output
        # columns; its taps only occupy the kh=1 K block (those rows ARE the
        # unpadded, strided x rows the 1x1 conv reads).
        band_s = _band_weights(params["ws"], W, Wo, stride, pad=0)[0]
        sc_cols = jnp.zeros((KH * W * Cin, Wo * Cout), jnp.bfloat16)
        sc_cols = sc_cols.at[W * Cin:2 * W * Cin, :].set(band_s)
        w1 = jnp.concatenate([w1, sc_cols], axis=1)
        s_s, t_s = _tile_bn(params["bns"], Wo)
        s1 = jnp.concatenate([s1, s_s], axis=1)
        t1 = jnp.concatenate([t1, t_s], axis=1)

    kernel = _make_block_kernel(H, W, Cin, Cmid, Cout, stride,
                                has_shortcut, b_blk)

    out_packed = pl.pallas_call(
        kernel,
        out_shape=jax.ShapeDtypeStruct((N, Ho, Wo * Cout), jnp.bfloat16),
        grid=(N // b_blk,),
        in_specs=[
            pl.BlockSpec((b_blk, H + 2, W * Cin), lambda n: (n, 0, 0)),
            pl.BlockSpec(w1.shape, lambda n: (0, 0)),
            pl.BlockSpec(s1.shape, lambda n: (0, 0)),
            pl.BlockSpec(t1.shape, lambda n: (0, 0)),
            pl.BlockSpec(w2.shape, lambda n: (0, 0)),
            pl.BlockSpec(s2.shape, lambda n: (0, 0)),
            pl.BlockSpec(t2.shape, lambda n: (0, 0)),
        ],
        out_specs=pl.BlockSpec((b_blk, Ho, Wo * Cout), lambda n: (n, 0, 0)),
        compiler_params=pltpu.CompilerParams(
            dimension_semantics=("parallel",)),
    )(xp, w1, s1, t1, w2, s2, t2)

    out = out_packed.reshape(N, Ho, Wo, Cout)      # unpack lanes -> (H, W, C)
    return jnp.transpose(out, (0, 3, 1, 2)).astype(x_nchw.dtype)   # -> NCHW


# ----------------------------------------------------------------------------
# deterministic synthetic parameters (PyTorch OIHW conventions)
# ----------------------------------------------------------------------------
def fold_bn(gamma, beta, running_mean, running_var, eps=1e-5):
    scale = gamma / jnp.sqrt(running_var + eps)
    bias = beta - running_mean * scale
    return scale, bias


def make_params(key, in_planes, planes, stride):
    ks = jax.random.split(key, 6)

    def bn_params(k, c):
        k1, k2, k3, k4 = jax.random.split(k, 4)
        gamma = 1.0 + 0.1 * jax.random.normal(k1, (c,), jnp.float32)
        beta = 0.1 * jax.random.normal(k2, (c,), jnp.float32)
        mean = 0.1 * jax.random.normal(k3, (c,), jnp.float32)
        var = 0.5 + jnp.abs(jax.random.normal(k4, (c,), jnp.float32))
        return fold_bn(gamma, beta, mean, var)

    p = {
        "w1": 0.1 * jax.random.normal(ks[0], (planes, in_planes, 3, 3),
                                      jnp.float32),            # OIHW
        "bn1": bn_params(ks[2], planes),
        "w2": 0.1 * jax.random.normal(ks[1], (planes, planes, 3, 3),
                                      jnp.float32),
        "bn2": bn_params(ks[3], planes),
    }
    if stride != 1 or in_planes != planes:                      # static Python
        p["ws"] = 0.1 * jax.random.normal(ks[4], (planes, in_planes, 1, 1),
                                          jnp.float32)
        p["bns"] = bn_params(ks[5], planes)
    return p


# ----------------------------------------------------------------------------
# pure-JAX reference (NCHW, like PyTorch) for the correctness check
# ----------------------------------------------------------------------------
def _ref_conv_bn(x, w_oihw, scale, bias, stride, pad, relu, residual=None):
    out = jax.lax.conv_general_dilated(
        x, w_oihw, window_strides=(stride, stride),
        padding=[(pad, pad), (pad, pad)],
        dimension_numbers=("NCHW", "OIHW", "NCHW"))
    out = out * scale.reshape(1, -1, 1, 1) + bias.reshape(1, -1, 1, 1)
    if residual is not None:
        out = out + residual
    if relu:
        out = jnp.maximum(out, 0.0)
    return out


def _ref_forward(x, params, stride):
    out1 = _ref_conv_bn(x, params["w1"], *params["bn1"], stride, 1, True)
    sc = (_ref_conv_bn(x, params["ws"], *params["bns"], stride, 0, False)
          if "ws" in params else x)
    return _ref_conv_bn(out1, params["w2"], *params["bn2"], 1, 1, True,
                        residual=sc)


# ----------------------------------------------------------------------------
if __name__ == "__main__":
    key = jax.random.PRNGKey(0)
    kx, kp = jax.random.split(key)

    batch, in_planes, planes, spatial, stride = 2, 4, 8, 16, 1
    # in_planes != planes -> exercises the fused 1x1-conv + BN shortcut path.
    x = jax.random.normal(kx, (batch, in_planes, spatial, spatial),
                          jnp.float32)                   # NCHW, like PyTorch
    params = make_params(kp, in_planes, planes, stride)

    fwd = jax.jit(functools.partial(basic_block_forward, stride=stride))
    out = fwd(x, params)
    jax.block_until_ready(out)

    ref = _ref_forward(x, params, stride)
    assert out.shape == (batch, planes, spatial, spatial)
    err = float(jnp.max(jnp.abs(out - ref)))
    # bf16 MXU operands (f32 accumulation) + bf16 output store => looser
    # tolerance than a pure-f32 path.
    assert err < 1e-1, err

    print("KERNEL_OK")
</pallas_src>

<mosaic_0001>
module attributes {stable_mosaic.version = 11 : i64} {
  func.func @kernel(%arg0: i32, %arg1: memref<2x18x64xbf16, #tpu.memory_space<vmem>>, %arg2: memref<192x256xbf16, #tpu.memory_space<vmem>>, %arg3: memref<1x256xf32, #tpu.memory_space<vmem>>, %arg4: memref<1x256xf32, #tpu.memory_space<vmem>>, %arg5: memref<384x128xbf16, #tpu.memory_space<vmem>>, %arg6: memref<1x128xf32, #tpu.memory_space<vmem>>, %arg7: memref<1x128xf32, #tpu.memory_space<vmem>>, %arg8: memref<2x16x128xbf16, #tpu.memory_space<vmem>>) attributes {dimension_semantics = [#tpu.dimension_semantics<parallel>], iteration_bounds = array<i64: 1>, scalar_prefetch = 0 : i64, scratch_operands = 0 : i64, tpu.core_type = #tpu.core_type<tc>, window_params = [{transform_indices = @transform_0, window_bounds = array<i64: 2, 18, 64>}, {pipeline_mode = #tpu.pipeline_mode<synchronous>, transform_indices = @transform_1, window_bounds = array<i64: 192, 256>}, {pipeline_mode = #tpu.pipeline_mode<synchronous>, transform_indices = @transform_2, window_bounds = array<i64: 1, 256>}, {pipeline_mode = #tpu.pipeline_mode<synchronous>, transform_indices = @transform_3, window_bounds = array<i64: 1, 256>}, {pipeline_mode = #tpu.pipeline_mode<synchronous>, transform_indices = @transform_4, window_bounds = array<i64: 384, 128>}, {pipeline_mode = #tpu.pipeline_mode<synchronous>, transform_indices = @transform_5, window_bounds = array<i64: 1, 128>}, {pipeline_mode = #tpu.pipeline_mode<synchronous>, transform_indices = @transform_6, window_bounds = array<i64: 1, 128>}, {transform_indices = @transform_7, window_bounds = array<i64: 2, 16, 128>}]} {
    %c0 = arith.constant 0 : index
    %c0_0 = arith.constant 0 : index
    %c0_1 = arith.constant 0 : index
    %0 = vector.load %arg1[%c0, %c0_0, %c0_1] : memref<2x18x64xbf16, #tpu.memory_space<vmem>>, vector<2x18x64xbf16>
    %1 = vector.extract_strided_slice %0 {offsets = [0, 0, 0], sizes = [2, 16, 64], strides = [1, 1, 1]} : vector<2x18x64xbf16> to vector<2x16x64xbf16>
    %2 = vector.extract_strided_slice %0 {offsets = [0, 1, 0], sizes = [2, 16, 64], strides = [1, 1, 1]} : vector<2x18x64xbf16> to vector<2x16x64xbf16>
    %3 = vector.extract_strided_slice %0 {offsets = [0, 2, 0], sizes = [2, 16, 64], strides = [1, 1, 1]} : vector<2x18x64xbf16> to vector<2x16x64xbf16>
    %4 = tpu.concatenate %1, %2, %3 in 2 : vector<2x16x64xbf16>, vector<2x16x64xbf16>, vector<2x16x64xbf16> -> vector<2x16x192xbf16>
    %5 = vector.shape_cast %4 : vector<2x16x192xbf16> to vector<32x192xbf16>
    %c0_2 = arith.constant 0 : index
    %c0_3 = arith.constant 0 : index
    %6 = vector.load %arg2[%c0_2, %c0_3] : memref<192x256xbf16, #tpu.memory_space<vmem>>, vector<192x256xbf16>
    %cst = arith.constant dense<0.000000e+00> : vector<32x256xf32>
    %7 = tpu.matmul %5, %6, %cst {dimension_numbers = #tpu.dot_dimension_numbers<[1], [0], [0], [1], [0, 0, 1, 1], [], []>} : vector<32x192xbf16>, vector<192x256xbf16>, vector<32x256xf32> -> vector<32x256xf32>
    %c0_4 = arith.constant 0 : index
    %c0_5 = arith.constant 0 : index
    %8 = vector.load %arg3[%c0_4, %c0_5] : memref<1x256xf32, #tpu.memory_space<vmem>>, vector<1x256xf32>
    %9 = vector.broadcast %8 : vector<1x256xf32> to vector<32x256xf32>
    %10 = arith.mulf %7, %9 : vector<32x256xf32>
    %c0_6 = arith.constant 0 : index
    %c0_7 = arith.constant 0 : index
    %11 = vector.load %arg4[%c0_6, %c0_7] : memref<1x256xf32, #tpu.memory_space<vmem>>, vector<1x256xf32>
    %12 = vector.broadcast %11 : vector<1x256xf32> to vector<32x256xf32>
    %13 = arith.addf %10, %12 : vector<32x256xf32>
    %14 = vector.extract_strided_slice %13 {offsets = [0, 0], sizes = [32, 128], strides = [1, 1]} : vector<32x256xf32> to vector<32x128xf32>
    %cst_8 = arith.constant 0.000000e+00 : f32
    %15 = vector.broadcast %cst_8 : f32 to vector<32x128xf32>
    %16 = arith.maximumf %14, %15 : vector<32x128xf32>
    %17 = vector.extract_strided_slice %13 {offsets = [0, 128], sizes = [32, 128], strides = [1, 1]} : vector<32x256xf32> to vector<32x128xf32>
    %18 = vector.shape_cast %16 : vector<32x128xf32> to vector<2x16x128xf32>
    %19 = arith.truncf %18 : vector<2x16x128xf32> to vector<2x16x128xbf16>
    %cst_9 = arith.constant 0.000000e+00 : bf16
    %20 = vector.broadcast %cst_9 : bf16 to vector<2x1x128xbf16>
    %21 = vector.extract_strided_slice %19 {offsets = [0, 0, 0], sizes = [2, 15, 128], strides = [1, 1, 1]} : vector<2x16x128xbf16> to vector<2x15x128xbf16>
    %22 = tpu.concatenate %20, %21 in 1 : vector<2x1x128xbf16>, vector<2x15x128xbf16> -> vector<2x16x128xbf16>
    %23 = vector.extract_strided_slice %19 {offsets = [0, 1, 0], sizes = [2, 15, 128], strides = [1, 1, 1]} : vector<2x16x128xbf16> to vector<2x15x128xbf16>
    %24 = tpu.concatenate %23, %20 in 1 : vector<2x15x128xbf16>, vector<2x1x128xbf16> -> vector<2x16x128xbf16>
    %25 = tpu.concatenate %22, %19, %24 in 2 : vector<2x16x128xbf16>, vector<2x16x128xbf16>, vector<2x16x128xbf16> -> vector<2x16x384xbf16>
    %26 = vector.shape_cast %25 : vector<2x16x384xbf16> to vector<32x384xbf16>
    %c0_10 = arith.constant 0 : index
    %c0_11 = arith.constant 0 : index
    %27 = vector.load %arg5[%c0_10, %c0_11] : memref<384x128xbf16, #tpu.memory_space<vmem>>, vector<384x128xbf16>
    %cst_12 = arith.constant dense<0.000000e+00> : vector<32x128xf32>
    %28 = tpu.matmul %26, %27, %cst_12 {dimension_numbers = #tpu.dot_dimension_numbers<[1], [0], [0], [1], [0, 0, 1, 1], [], []>} : vector<32x384xbf16>, vector<384x128xbf16>, vector<32x128xf32> -> vector<32x128xf32>
    %c0_13 = arith.constant 0 : index
    %c0_14 = arith.constant 0 : index
    %29 = vector.load %arg6[%c0_13, %c0_14] : memref<1x128xf32, #tpu.memory_space<vmem>>, vector<1x128xf32>
    %30 = vector.broadcast %29 : vector<1x128xf32> to vector<32x128xf32>
    %31 = arith.mulf %28, %30 : vector<32x128xf32>
    %c0_15 = arith.constant 0 : index
    %c0_16 = arith.constant 0 : index
    %32 = vector.load %arg7[%c0_15, %c0_16] : memref<1x128xf32, #tpu.memory_space<vmem>>, vector<1x128xf32>
    %33 = vector.broadcast %32 : vector<1x128xf32> to vector<32x128xf32>
    %34 = arith.addf %31, %33 : vector<32x128xf32>
    %35 = arith.addf %34, %17 : vector<32x128xf32>
    %cst_17 = arith.constant 0.000000e+00 : f32
    %36 = vector.broadcast %cst_17 : f32 to vector<32x128xf32>
    %37 = arith.maximumf %35, %36 : vector<32x128xf32>
    %38 = vector.shape_cast %37 : vector<32x128xf32> to vector<2x16x128xf32>
    %39 = arith.truncf %38 : vector<2x16x128xf32> to vector<2x16x128xbf16>
    %c0_18 = arith.constant 0 : index
    %c0_19 = arith.constant 0 : index
    %c0_20 = arith.constant 0 : index
    %40 = vector.load %arg8[%c0_18, %c0_19, %c0_20] : memref<2x16x128xbf16, #tpu.memory_space<vmem>>, vector<2x16x128xbf16>
    tpu.vector_store %arg8[%c0_18, %c0_19, %c0_20], %39 {strides = array<i32>} : memref<2x16x128xbf16, #tpu.memory_space<vmem>>, vector<2x16x128xbf16>,
    return
  }
  func.func @transform_0(%arg0: i32) -> (i32, i32, i32) {
    %c0_i32 = arith.constant 0 : i32
    %c0_i32_0 = arith.constant 0 : i32
    %c0_i32_1 = arith.constant 0 : i32
    return %arg0, %c0_i32, %c0_i32_0 : i32, i32, i32
  }
  func.func @transform_1(%arg0: i32) -> (i32, i32) {
    %c0_i32 = arith.constant 0 : i32
    %c0_i32_0 = arith.constant 0 : i32
    %c0_i32_1 = arith.constant 0 : i32
    return %c0_i32, %c0_i32_0 : i32, i32
  }
  func.func @transform_2(%arg0: i32) -> (i32, i32) {
    %c0_i32 = arith.constant 0 : i32
    %c0_i32_0 = arith.constant 0 : i32
    %c0_i32_1 = arith.constant 0 : i32
    return %c0_i32, %c0_i32_0 : i32, i32
  }
  func.func @transform_3(%arg0: i32) -> (i32, i32) {
    %c0_i32 = arith.constant 0 : i32
    %c0_i32_0 = arith.constant 0 : i32
    %c0_i32_1 = arith.constant 0 : i32
    return %c0_i32, %c0_i32_0 : i32, i32
  }
  func.func @transform_4(%arg0: i32) -> (i32, i32) {
    %c0_i32 = arith.constant 0 : i32
    %c0_i32_0 = arith.constant 0 : i32
    %c0_i32_1 = arith.constant 0 : i32
    return %c0_i32, %c0_i32_0 : i32, i32
  }
  func.func @transform_5(%arg0: i32) -> (i32, i32) {
    %c0_i32 = arith.constant 0 : i32
    %c0_i32_0 = arith.constant 0 : i32
    %c0_i32_1 = arith.constant 0 : i32
    return %c0_i32, %c0_i32_0 : i32, i32
  }
  func.func @transform_6(%arg0: i32) -> (i32, i32) {
    %c0_i32 = arith.constant 0 : i32
    %c0_i32_0 = arith.constant 0 : i32
    %c0_i32_1 = arith.constant 0 : i32
    return %c0_i32, %c0_i32_0 : i32, i32
  }
  func.func @transform_7(%arg0: i32) -> (i32, i32, i32) {
    %c0_i32 = arith.constant 0 : i32
    %c0_i32_0 = arith.constant 0 : i32
    %c0_i32_1 = arith.constant 0 : i32
    return %arg0, %c0_i32, %c0_i32_0 : i32, i32, i32
  }
}

</mosaic_0001>

<llo_original>
// kernel: tile.33
$region0: #{tile.33}
  #allocation0 [shape = 's32[1]{0}', space=sflag, size = 0x4, scoped, tag = 'scoped memory for tile.33']
  %s0 = inlined_call_operand.vmem [shape: f32[8], index: 0, kind: input, shape index: {}]
  %s1 = inlined_call_operand.vmem [shape: f32[16,8], index: 1, kind: output, shape index: {}]
  // Predicated region
  $region2: #{tile.33} parent=0 // pred_check
    _
  $region3: #{tile.33} parent=0 // pred_check_branch
    %3 = sbr.rel (0) target = $region5
  $region4: #{tile.33} parent=0 // pred_region
    _
  $region5: #{tile.33} parent=0 // pred_fallthru
    _
  %v4 = vld [vmem:[%s0] ss:$0 sm:$0xff]
  %5 = vst [vmem:[%s1] sm:$0xff] %v4
  %s6 = scalar_lea.vmem %s1, 8
  %7 = vst [vmem:[%s6] sm:$0xff] %v4

// kernel: tile.34
$region0: #{tile.34}
  %s0 = inlined_call_operand.vmem [shape: f32[16,8], index: 0, kind: input, shape index: {}]
  %s1 = inlined_call_operand.vmem [shape: f32[1,128], index: 1, kind: output, shape index: {}]
  $region1: #{tile.34} parent=0
    #allocation0 [shape = 'u8[4096]{0}', space=vmem, size = 0x1000, scoped, tag = 'scoped mem for output reshape']
    %v2 = vld [vmem:[%s0] sm:$0x1]
    %vm3 = vcmask 64512
    %4 = vst.msk [vmem:[#allocation0] sm:$0x1] %vm3, %v2
    %s5 = scalar_lea.vmem %s0, 15
    %v6 = vld [vmem:[%s5] sm:$0x1]
    %7 = vrot.lane.b32.xlu0 %v6, 120
    %v8 = vpop.permute.xlu0 %7
    %vm9 = vcmask 1048512
    %10 = vst.msk [vmem:[#allocation0] sm:$0x1] %vm9, %v8
    %s11 = scalar_lea.vmem %s0, 14
    %v12 = vld [vmem:[%s11] sm:$0x1]
    %13 = vrot.lane.b32.xlu0 %v12, 112
    %v14 = vpop.permute.xlu0 %13
    %vm15 = vcmask 982912
    %16 = vst.msk [vmem:[#allocation0] sm:$0x1] %vm15, %v14
    %s17 = scalar_lea.vmem %s0, 13
    %v18 = vld [vmem:[%s17] sm:$0x1]
    %19 = vrot.lane.b32.xlu0 %v18, 104
    %v20 = vpop.permute.xlu0 %19
    %vm21 = vcmask 917312
    %22 = vst.msk [vmem:[#allocation0] sm:$0x1] %vm21, %v20
    %s23 = scalar_lea.vmem %s0, 12
    %v24 = vld [vmem:[%s23] sm:$0x1]
    %25 = vrot.lane.b32.xlu0 %v24, 96
    %v26 = vpop.permute.xlu0 %25
    %vm27 = vcmask 851712
    %28 = vst.msk [vmem:[#allocation0] sm:$0x1] %vm27, %v26
    %s29 = scalar_lea.vmem %s0, 11
    %v30 = vld [vmem:[%s29] sm:$0x1]
    %31 = vrot.lane.b32.xlu0 %v30, 88
    %v32 = vpop.permute.xlu0 %31
    %vm33 = vcmask 786112
    %34 = vst.msk [vmem:[#allocation0] sm:$0x1] %vm33, %v32
    %s35 = scalar_lea.vmem %s0, 10
    %v36 = vld [vmem:[%s35] sm:$0x1]
    %37 = vrot.lane.b32.xlu0 %v36, 80
    %v38 = vpop.permute.xlu0 %37
    %vm39 = vcmask 720512
    %40 = vst.msk [vmem:[#allocation0] sm:$0x1] %vm39, %v38
    %s41 = scalar_lea.vmem %s0, 9
    %v42 = vld [vmem:[%s41] sm:$0x1]
    %43 = vrot.lane.b32.xlu0 %v42, 72
    %v44 = vpop.permute.xlu0 %43
    %vm45 = vcmask 654912
    %46 = vst.msk [vmem:[#allocation0] sm:$0x1] %vm45, %v44
    %s47 = scalar_lea.vmem %s0, 8
    %v48 = vld [vmem:[%s47] sm:$0x1]
    %49 = vrot.lane.b32.xlu0 %v48, 64
    %v50 = vpop.permute.xlu0 %49
    %vm51 = vcmask 589312
    %52 = vst.msk [vmem:[#allocation0] sm:$0x1] %vm51, %v50
    %s53 = scalar_lea.vmem %s0, 7
    %v54 = vld [vmem:[%s53] sm:$0x1]
    %55 = vrot.lane.b32.xlu0 %v54, 56
    %v56 = vpop.permute.xlu0 %55
    %vm57 = vcmask 523712
    %58 = vst.msk [vmem:[#allocation0] sm:$0x1] %vm57, %v56
    %s59 = scalar_lea.vmem %s0, 6
    %v60 = vld [vmem:[%s59] sm:$0x1]
    %61 = vrot.lane.b32.xlu0 %v60, 48
    %v62 = vpop.permute.xlu0 %61
    %vm63 = vcmask 458112
    %64 = vst.msk [vmem:[#allocation0] sm:$0x1] %vm63, %v62
    %s65 = scalar_lea.vmem %s0, 5
    %v66 = vld [vmem:[%s65] sm:$0x1]
    %67 = vrot.lane.b32.xlu0 %v66, 40
    %v68 = vpop.permute.xlu0 %67
    %vm69 = vcmask 392512
    %70 = vst.msk [vmem:[#allocation0] sm:$0x1] %vm69, %v68
    %s71 = scalar_lea.vmem %s0, 4
    %v72 = vld [vmem:[%s71] sm:$0x1]
    %73 = vrot.lane.b32.xlu0 %v72, 32
    %v74 = vpop.permute.xlu0 %73
    %vm75 = vcmask 326912
    %76 = vst.msk [vmem:[#allocation0] sm:$0x1] %vm75, %v74
    %s77 = scalar_lea.vmem %s0, 3
    %v78 = vld [vmem:[%s77] sm:$0x1]
    %79 = vrot.lane.b32.xlu0 %v78, 24
    %v80 = vpop.permute.xlu0 %79
    %vm81 = vcmask 261312
    %82 = vst.msk [vmem:[#allocation0] sm:$0x1] %vm81, %v80
    %s83 = scalar_lea.vmem %s0, 2
    %v84 = vld [vmem:[%s83] sm:$0x1]
    %85 = vrot.lane.b32.xlu0 %v84, 16
    %v86 = vpop.permute.xlu0 %85
    %vm87 = vcmask 195712
    %88 = vst.msk [vmem:[#allocation0] sm:$0x1] %vm87, %v86
    %s89 = scalar_lea.vmem %s0, 1
    %v90 = vld [vmem:[%s89] sm:$0x1]
    %91 = vrot.lane.b32.xlu0 %v90, 8
    %v92 = vpop.permute.xlu0 %91
    %vm93 = vcmask 130112
    %94 = vst.msk [vmem:[#allocation0] sm:$0x1] %vm93, %v92
    %s96 = sshllo.u32 0, 1
    %v98 = vld [vmem:[#allocation0] sm:%s96]
    %s99 = sshllo.u32 0, 1
    %100 = vst [vmem:[%s1] sm:%s99] %v98

// kernel: basic_block_forward.1
$region0: #{basic_block_forward.1}
  #allocation0 [shape = 'u32[]', space=smem, size = 0x4, offset = 0x4, fixed_abs, tag = 'smem constant byte address 0x4 - core index']
  #allocation1 [shape = 'u32[144,128]{1,0:T(1,128)}', space=vmem, size = 0x12000, scoped, tag = 'internal scratch']
  %s0 = inlined_call_operand.vmem [shape: bf16[2,18,64], index: 0, kind: input, shape index: {}]
  %s1 = inlined_call_operand.vmem [shape: bf16[192,256], index: 1, kind: input, shape index: {}]
  %s2 = inlined_call_operand.vmem [shape: f32[1,256], index: 2, kind: input, shape index: {}]
  %s3 = inlined_call_operand.vmem [shape: f32[1,256], index: 3, kind: input, shape index: {}]
  %s4 = inlined_call_operand.vmem [shape: bf16[384,128], index: 4, kind: input, shape index: {}]
  %s5 = inlined_call_operand.vmem [shape: f32[1,128], index: 5, kind: input, shape index: {}]
  %s6 = inlined_call_operand.vmem [shape: f32[1,128], index: 6, kind: input, shape index: {}]
  %s7 = inlined_call_operand.vmem [shape: bf16[2,16,128], index: 7, kind: output, shape index: {}]
  %s8 = sld [smem:[#allocation0]]
  $region38: #{basic_block_forward.1} parent=0
    _
  %s10 = ssub.s32 1, %s8
  %s11 = scalar_select 0, %s10, %s8
  // Predicated region
  $region2: #{basic_block_forward.1} parent=0 // pred_check
    _
  $region3: #{basic_block_forward.1} parent=0 // pred_check_branch
    %13 = sbr.rel (0) target = $region5
  $region4: #{basic_block_forward.1} parent=0 // pred_region
    _
  $region5: #{basic_block_forward.1} parent=0 // pred_fallthru
    _
  // Predicated region
  $region6: #{basic_block_forward.1} parent=0 // pred_check
    _
  $region7: #{basic_block_forward.1} parent=0 // pred_check_branch
    %15 = sbr.rel (0) target = $region9
  $region8: #{basic_block_forward.1} parent=0 // pred_region
    _
  $region9: #{basic_block_forward.1} parent=0 // pred_fallthru
    _
  // Predicated region
  $region10: #{basic_block_forward.1} parent=0 // pred_check
    _
  $region11: #{basic_block_forward.1} parent=0 // pred_check_branch
    %17 = sbr.rel (0) target = $region13
  $region12: #{basic_block_forward.1} parent=0 // pred_region
    _
  $region13: #{basic_block_forward.1} parent=0 // pred_fallthru
    _
  // Predicated region
  $region14: #{basic_block_forward.1} parent=0 // pred_check
    _
  $region15: #{basic_block_forward.1} parent=0 // pred_check_branch
    %19 = sbr.rel (0) target = $region17
  $region16: #{basic_block_forward.1} parent=0 // pred_region
    _
  $region17: #{basic_block_forward.1} parent=0 // pred_fallthru
    _
  // Predicated region
  $region18: #{basic_block_forward.1} parent=0 // pred_check
    _
  $region19: #{basic_block_forward.1} parent=0 // pred_check_branch
    %21 = sbr.rel (0) target = $region21
  $region20: #{basic_block_forward.1} parent=0 // pred_region
    _
  $region21: #{basic_block_forward.1} parent=0 // pred_fallthru
    _
  // Predicated region
  $region22: #{basic_block_forward.1} parent=0 // pred_check
    _
  $region23: #{basic_block_forward.1} parent=0 // pred_check_branch
    %23 = sbr.rel (0) target = $region25
  $region24: #{basic_block_forward.1} parent=0 // pred_region
    _
  $region25: #{basic_block_forward.1} parent=0 // pred_fallthru
    _
  // Predicated region
  $region26: #{basic_block_forward.1} parent=0 // pred_check
    _
  $region27: #{basic_block_forward.1} parent=0 // pred_check_branch
    %25 = sbr.rel (0) target = $region29
  $region28: #{basic_block_forward.1} parent=0 // pred_region
    _
  $region29: #{basic_block_forward.1} parent=0 // pred_fallthru
    _
  %v27 = vld [vmem:[%s0] sm:$0xf]
  %v28 = vld [vmem:[%s0 + $0x4] sm:$0xf]
  %v29 = vld [vmem:[%s0 + $0x8] sm:$0x1]
  %v30 = vld [vmem:[%s0 + $0xc] sm:$0xf]
  %v31 = vld [vmem:[%s0 + $0x10] sm:$0xf]
  %v32 = vld [vmem:[%s0 + $0x14] sm:$0x1]
  %v37 = vunpack.c.l.b16 %v27
  %v38 = vunpack.c.l.b16 %v28
  %v39 = vunpack.c.l.b16 %v30
  %v40 = vunpack.c.l.b16 %v31
  %v41 = vpack.c.b16 %v38, %v37
  %v42 = vpack.c.b16 %v40, %v39
  %v45 = vunpack.c.l.b16 %v29
  %v46 = vunpack.c.l.b16 %v32
  %v47 = vpack.c.b16 %v45, %v45
  %v48 = vpack.c.b16 %v46, %v46
  %vm49 = vsmask.f32 7424
  %v51 = vshrl.u32 %v41, 16
  %v53 = vshll.u32 %v41, 16
  %v55 = vrot.slane %v53, 1
  %v56 = vor.u32 %v51, %v55
  %v58 = vshll.u32 %v47, 16
  %v60 = vrot.slane %v58, 1
  %v61 = vsel %vm49, %v56, %v60
  %v63 = vshrl.u32 %v42, 16
  %v65 = vshll.u32 %v42, 16
  %v67 = vrot.slane %v65, 1
  %v68 = vor.u32 %v63, %v67
  %v70 = vshll.u32 %v48, 16
  %v72 = vrot.slane %v70, 1
  %v73 = vsel %vm49, %v68, %v72
  %74 = vrot.lane.b32.xlu0 %v61, 64
  %v75 = vpop.permute.xlu0 %74
  %76 = vrot.lane.b32.xlu0 %v73, 64
  %v77 = vpop.permute.xlu0 %76
  %vm78 = vcmask 1046528
  %v79 = vrot.slane %v41, 1
  %v80 = vrot.slane %v47, 1
  %v81 = vsel %vm78, %v79, %v80
  %v82 = vrot.slane %v42, 1
  %v83 = vrot.slane %v48, 1
  %v84 = vsel %vm78, %v82, %v83
  %vm85 = vcmask 523264
  %v87 = vsel %vm85, %v41, %v75
  %v90 = vsel %vm85, %v42, %v77
  %v92 = vld [vmem:[%s1] sm:$0xff]
  %v93 = vld [vmem:[%s1 + $0x8] sm:$0xff]
  %v94 = vld [vmem:[%s1 + $0x10] sm:$0xff]
  %v95 = vld [vmem:[%s1 + $0x18] sm:$0xff]
  %v96 = vld [vmem:[%s1 + $0x20] sm:$0xff]
  %v97 = vld [vmem:[%s1 + $0x28] sm:$0xff]
  %v98 = vld [vmem:[%s1 + $0x30] sm:$0xff]
  %v99 = vld [vmem:[%s1 + $0x38] sm:$0xff]
  %v100 = vld [vmem:[%s1 + $0x40] sm:$0xff]
  %v101 = vld [vmem:[%s1 + $0x48] sm:$0xff]
  %v102 = vld [vmem:[%s1 + $0x50] sm:$0xff]
  %v103 = vld [vmem:[%s1 + $0x58] sm:$0xff]
  %v104 = vld [vmem:[%s1 + $0x60] sm:$0xff]
  %v105 = vld [vmem:[%s1 + $0x68] sm:$0xff]
  %v106 = vld [vmem:[%s1 + $0x70] sm:$0xff]
  %v107 = vld [vmem:[%s1 + $0x78] sm:$0xff]
  %v108 = vld [vmem:[%s1 + $0x80] sm:$0xff]
  %v109 = vld [vmem:[%s1 + $0x88] sm:$0xff]
  %v110 = vld [vmem:[%s1 + $0x90] sm:$0xff]
  %v111 = vld [vmem:[%s1 + $0x98] sm:$0xff]
  %v112 = vld [vmem:[%s1 + $0xa0] sm:$0xff]
  %v113 = vld [vmem:[%s1 + $0xa8] sm:$0xff]
  %v114 = vld [vmem:[%s1 + $0xb0] sm:$0xff]
  %v115 = vld [vmem:[%s1 + $0xb8] sm:$0xff]
  %v140 = vunpack.c.l.b16 %v92
  %v141 = vunpack.c.h.b16 %v92
  %v142 = vunpack.c.l.b16 %v93
  %v143 = vunpack.c.h.b16 %v93
  %v144 = vunpack.c.l.b16 %v94
  %v145 = vunpack.c.h.b16 %v94
  %v146 = vunpack.c.l.b16 %v95
  %v147 = vunpack.c.h.b16 %v95
  %v148 = vunpack.c.l.b16 %v96
  %v149 = vunpack.c.h.b16 %v96
  %v150 = vunpack.c.l.b16 %v97
  %v151 = vunpack.c.h.b16 %v97
  %v152 = vunpack.c.l.b16 %v98
  %v153 = vunpack.c.h.b16 %v98
  %v154 = vunpack.c.l.b16 %v99
  %v155 = vunpack.c.h.b16 %v99
  %v156 = vunpack.c.l.b16 %v100
  %v157 = vunpack.c.h.b16 %v100
  %v158 = vunpack.c.l.b16 %v101
  %v159 = vunpack.c.h.b16 %v101
  %v160 = vunpack.c.l.b16 %v102
  %v161 = vunpack.c.h.b16 %v102
  %v162 = vunpack.c.l.b16 %v103
  %v163 = vunpack.c.h.b16 %v103
  %v164 = vunpack.c.l.b16 %v104
  %v165 = vunpack.c.h.b16 %v104
  %v166 = vunpack.c.l.b16 %v105
  %v167 = vunpack.c.h.b16 %v105
  %v168 = vunpack.c.l.b16 %v106
  %v169 = vunpack.c.h.b16 %v106
  %v170 = vunpack.c.l.b16 %v107
  %v171 = vunpack.c.h.b16 %v107
  %v172 = vunpack.c.l.b16 %v108
  %v173 = vunpack.c.h.b16 %v108
  %v174 = vunpack.c.l.b16 %v109
  %v175 = vunpack.c.h.b16 %v109
  %v176 = vunpack.c.l.b16 %v110
  %v177 = vunpack.c.h.b16 %v110
  %v178 = vunpack.c.l.b16 %v111
  %v179 = vunpack.c.h.b16 %v111
  %v180 = vunpack.c.l.b16 %v112
  %v181 = vunpack.c.h.b16 %v112
  %v182 = vunpack.c.l.b16 %v113
  %v183 = vunpack.c.h.b16 %v113
  %v184 = vunpack.c.l.b16 %v114
  %v185 = vunpack.c.h.b16 %v114
  %v186 = vunpack.c.l.b16 %v115
  %v187 = vunpack.c.h.b16 %v115
  %v188 = vpack.c.b16 %v142, %v140
  %v189 = vpack.c.b16 %v143, %v141
  %v190 = vpack.c.b16 %v146, %v144
  %v191 = vpack.c.b16 %v147, %v145
  %v192 = vpack.c.b16 %v150, %v148
  %v193 = vpack.c.b16 %v151, %v149
  %v194 = vpack.c.b16 %v154, %v152
  %v195 = vpack.c.b16 %v155, %v153
  %v196 = vpack.c.b16 %v158, %v156
  %v197 = vpack.c.b16 %v159, %v157
  %v198 = vpack.c.b16 %v162, %v160
  %v199 = vpack.c.b16 %v163, %v161
  %v200 = vpack.c.b16 %v166, %v164
  %v201 = vpack.c.b16 %v167, %v165
  %v202 = vpack.c.b16 %v170, %v168
  %v203 = vpack.c.b16 %v171, %v169
  %v204 = vpack.c.b16 %v174, %v172
  %v205 = vpack.c.b16 %v175, %v173
  %v206 = vpack.c.b16 %v178, %v176
  %v207 = vpack.c.b16 %v179, %v177
  %v208 = vpack.c.b16 %v182, %v180
  %v209 = vpack.c.b16 %v183, %v181
  %v210 = vpack.c.b16 %v186, %v184
  %v211 = vpack.c.b16 %v187, %v185
  %v237 = vsel %vm85, %v81, 0
  %v240 = vsel %vm85, %v84, 0
  %242 = vmatprep.subr.bf16.mxu0 %v189
  %243 = vmatpush1.bf16.msra.mxu0 %v188
  %244 = vmatprep.subr.bf16.mxu0 %v191
  %245 = vmatpush1.bf16.msra.mxu0 %v190
  %246 = vmatprep.subr.bf16.mxu0 %v193
  %247 = vmatpush1.bf16.msra.mxu0 %v192
  %248 = vmatprep.subr.bf16.mxu0 %v195
  %249 = vmatpush1.bf16.msra.mxu0 %v194
  %250 = vmatprep.subr.bf16.mxu0 %v197
  %251 = vmatpush1.bf16.msra.mxu0 %v196
  %252 = vmatprep.subr.bf16.mxu0 %v199
  %253 = vmatpush1.bf16.msra.mxu0 %v198
  %254 = vmatprep.subr.bf16.mxu0 %v201
  %255 = vmatpush1.bf16.msra.mxu0 %v200
  %256 = vmatprep.subr.bf16.mxu0 %v203
  %257 = vmatpush1.bf16.msra.mxu0 %v202
  %258 = vmatprep.subr.bf16.mxu0 %v205
  %259 = vmatpush1.bf16.msra.mxu0 %v204
  %260 = vmatprep.subr.bf16.mxu0 %v207
  %261 = vmatpush1.bf16.msra.mxu0 %v206
  %262 = vmatprep.subr.bf16.mxu0 %v209
  %263 = vmatpush1.bf16.msra.mxu0 %v208
  %264 = vmatprep.subr.bf16.mxu0 %v211
  %265 = vmatpush1.bf16.msra.mxu0 %v210
  %266 = vmatprep.subr.bf16.mxu0 0
  %267 = vmatpush1.bf16.msra.mxu0 0
  %268 = vmatprep.subr.bf16.mxu0 0
  %269 = vmatpush1.bf16.msra.mxu0 0
  %270 = vmatprep.subr.bf16.mxu0 0
  %271 = vmatpush1.bf16.msra.mxu0 0
  %272 = vmatprep.subr.bf16.mxu0 0
  %273 = vmatpush1.bf16.msra.mxu0 0
  %274 = vmatprep.mubr.bf16.mxu0 %v237
  %275 = vmatmul.mubr.bf16.gmra.mrb[0].mxu0 %v87
  %v276 = vpop.f32.mrb[0].mxu0
  %v277 = vadd.f32 0.0, %v276
  %v278 = vpop.f32.mrb[0].mxu0
  %v279 = vadd.f32 0.0, %v278
  %v280 = vpop.f32.mrb[0].mxu0
  %v281 = vadd.f32 0.0, %v280
  %v282 = vpop.f32.mrb[0].mxu0
  %v283 = vadd.f32 0.0, %v282
  %284 = vmatprep.mubr.bf16.mxu0 %v240
  %285 = vmatmul.mubr.bf16.gmra.mrb[0].mxu0 %v90
  %v286 = vpop.f32.mrb[0].mxu0
  %v287 = vadd.f32 0.0, %v286
  %v288 = vpop.f32.mrb[0].mxu0
  %v289 = vadd.f32 0.0, %v288
  %v290 = vpop.f32.mrb[0].mxu0
  %v291 = vadd.f32 0.0, %v290
  %v292 = vpop.f32.mrb[0].mxu0
  %v293 = vadd.f32 0.0, %v292
  %294 = vdwg.mxu0
  %v295 = vld [vmem:[%s2] sm:$0x3]
  %v297 = vlaneseq
  %v298 = vshrl.u32 %v297, 7
  %v299 = vsub.s32 0, %v298
  %v300 = vrot.slane %v295, %v299
  %v301 = vlaneseq
  %v302 = vshrl.u32 %v301, 7
  %v303 = vsub.s32 1, %v302
  %v304 = vrot.slane %v295, %v303
  %v307 = vmul.f32 %v277, %v300
  %v308 = vmul.f32 %v279, %v304
  %v309 = vmul.f32 %v281, %v300
  %v310 = vmul.f32 %v283, %v304
  %v311 = vmul.f32 %v287, %v300
  %v312 = vmul.f32 %v289, %v304
  %v313 = vmul.f32 %v291, %v300
  %v314 = vmul.f32 %v293, %v304
  %v315 = vld [vmem:[%s3] sm:$0x3]
  %v317 = vlaneseq
  %v318 = vshrl.u32 %v317, 7
  %v319 = vsub.s32 0, %v318
  %v320 = vrot.slane %v315, %v319
  %v321 = vlaneseq
  %v322 = vshrl.u32 %v321, 7
  %v323 = vsub.s32 1, %v322
  %v324 = vrot.slane %v315, %v323
  %v327 = vadd.f32 %v307, %v320
  %v328 = vadd.f32 %v308, %v324
  %v329 = vadd.f32 %v309, %v320
  %v330 = vadd.f32 %v310, %v324
  %v331 = vadd.f32 %v311, %v320
  %v332 = vadd.f32 %v312, %v324
  %v333 = vadd.f32 %v313, %v320
  %v334 = vadd.f32 %v314, %v324
  %v335 = vmax.f32 %v327, 0.0
  %v336 = vmax.f32 %v329, 0.0
  %v337 = vmax.f32 %v331, 0.0
  %v338 = vmax.f32 %v333, 0.0
  %v339 = vpack.c.bf16 %v336, %v335
  %v340 = vpack.c.bf16 %v338, %v337
  %v342 = vshrl.u32 %v339, 16
  %v344 = vrot.slane %v342, 7
  %v345 = vshll.u32 %v339, 16
  %v347 = vor.u32 %v344, %v345
  %v349 = vshrl.u32 %v340, 16
  %v351 = vrot.slane %v349, 7
  %v352 = vshll.u32 %v340, 16
  %v354 = vor.u32 %v351, %v352
  %vm357 = vcmask 1040384
  %vm358 = vsmask.f32 256
  %vm359 = vmand %vm357, %vm358
  %v360 = vsel %vm359, 0, %v347
  %v361 = vsel %vm359, 0, %v354
  %v362 = vrot.slane %v345, 1
  %v363 = vor.u32 %v342, %v362
  %v364 = vrot.slane %v352, 1
  %v365 = vor.u32 %v349, %v364
  %vm368 = vcmask 1047552
  %vm369 = vmand %vm368, %vm49
  %v370 = vsel %vm369, %v363, 0
  %v371 = vsel %vm369, %v365, 0
  %v372 = vld [vmem:[%s4] sm:$0xf]
  %v373 = vld [vmem:[%s4 + $0x4] sm:$0xf]
  %v374 = vld [vmem:[%s4 + $0x8] sm:$0xf]
  %v375 = vld [vmem:[%s4 + $0xc] sm:$0xf]
  %v376 = vld [vmem:[%s4 + $0x10] sm:$0xf]
  %v377 = vld [vmem:[%s4 + $0x14] sm:$0xf]
  %v378 = vld [vmem:[%s4 + $0x18] sm:$0xf]
  %v379 = vld [vmem:[%s4 + $0x1c] sm:$0xf]
  %v380 = vld [vmem:[%s4 + $0x20] sm:$0xf]
  %v381 = vld [vmem:[%s4 + $0x24] sm:$0xf]
  %v382 = vld [vmem:[%s4 + $0x28] sm:$0xf]
  %v383 = vld [vmem:[%s4 + $0x2c] sm:$0xf]
  %v384 = vld [vmem:[%s4 + $0x30] sm:$0xf]
  %v385 = vld [vmem:[%s4 + $0x34] sm:$0xf]
  %v386 = vld [vmem:[%s4 + $0x38] sm:$0xf]
  %v387 = vld [vmem:[%s4 + $0x3c] sm:$0xf]
  %v388 = vld [vmem:[%s4 + $0x40] sm:$0xf]
  %v389 = vld [vmem:[%s4 + $0x44] sm:$0xf]
  %v390 = vld [vmem:[%s4 + $0x48] sm:$0xf]
  %v391 = vld [vmem:[%s4 + $0x4c] sm:$0xf]
  %v392 = vld [vmem:[%s4 + $0x50] sm:$0xf]
  %v393 = vld [vmem:[%s4 + $0x54] sm:$0xf]
  %v394 = vld [vmem:[%s4 + $0x58] sm:$0xf]
  %v395 = vld [vmem:[%s4 + $0x5c] sm:$0xf]
  %v396 = vld [vmem:[%s4 + $0x60] sm:$0xf]
  %v397 = vld [vmem:[%s4 + $0x64] sm:$0xf]
  %v398 = vld [vmem:[%s4 + $0x68] sm:$0xf]
  %v399 = vld [vmem:[%s4 + $0x6c] sm:$0xf]
  %v400 = vld [vmem:[%s4 + $0x70] sm:$0xf]
  %v401 = vld [vmem:[%s4 + $0x74] sm:$0xf]
  %v402 = vld [vmem:[%s4 + $0x78] sm:$0xf]
  %v403 = vld [vmem:[%s4 + $0x7c] sm:$0xf]
  %v404 = vld [vmem:[%s4 + $0x80] sm:$0xf]
  %v405 = vld [vmem:[%s4 + $0x84] sm:$0xf]
  %v406 = vld [vmem:[%s4 + $0x88] sm:$0xf]
  %v407 = vld [vmem:[%s4 + $0x8c] sm:$0xf]
  %v408 = vld [vmem:[%s4 + $0x90] sm:$0xf]
  %v409 = vld [vmem:[%s4 + $0x94] sm:$0xf]
  %v410 = vld [vmem:[%s4 + $0x98] sm:$0xf]
  %v411 = vld [vmem:[%s4 + $0x9c] sm:$0xf]
  %v412 = vld [vmem:[%s4 + $0xa0] sm:$0xf]
  %v413 = vld [vmem:[%s4 + $0xa4] sm:$0xf]
  %v414 = vld [vmem:[%s4 + $0xa8] sm:$0xf]
  %v415 = vld [vmem:[%s4 + $0xac] sm:$0xf]
  %v416 = vld [vmem:[%s4 + $0xb0] sm:$0xf]
  %v417 = vld [vmem:[%s4 + $0xb4] sm:$0xf]
  %v418 = vld [vmem:[%s4 + $0xb8] sm:$0xf]
  %v419 = vld [vmem:[%s4 + $0xbc] sm:$0xf]
  %v468 = vunpack.c.l.b16 %v372
  %v469 = vunpack.c.l.b16 %v373
  %v470 = vunpack.c.l.b16 %v374
  %v471 = vunpack.c.l.b16 %v375
  %v472 = vunpack.c.l.b16 %v376
  %v473 = vunpack.c.l.b16 %v377
  %v474 = vunpack.c.l.b16 %v378
  %v475 = vunpack.c.l.b16 %v379
  %v476 = vunpack.c.l.b16 %v380
  %v477 = vunpack.c.l.b16 %v381
  %v478 = vunpack.c.l.b16 %v382
  %v479 = vunpack.c.l.b16 %v383
  %v480 = vunpack.c.l.b16 %v384
  %v481 = vunpack.c.l.b16 %v385
  %v482 = vunpack.c.l.b16 %v386
  %v483 = vunpack.c.l.b16 %v387
  %v484 = vunpack.c.l.b16 %v388
  %v485 = vunpack.c.l.b16 %v389
  %v486 = vunpack.c.l.b16 %v390
  %v487 = vunpack.c.l.b16 %v391
  %v488 = vunpack.c.l.b16 %v392
  %v489 = vunpack.c.l.b16 %v393
  %v490 = vunpack.c.l.b16 %v394
  %v491 = vunpack.c.l.b16 %v395
  %v492 = vunpack.c.l.b16 %v396
  %v493 = vunpack.c.l.b16 %v397
  %v494 = vunpack.c.l.b16 %v398
  %v495 = vunpack.c.l.b16 %v399
  %v496 = vunpack.c.l.b16 %v400
  %v497 = vunpack.c.l.b16 %v401
  %v498 = vunpack.c.l.b16 %v402
  %v499 = vunpack.c.l.b16 %v403
  %v500 = vunpack.c.l.b16 %v404
  %v501 = vunpack.c.l.b16 %v405
  %v502 = vunpack.c.l.b16 %v406
  %v503 = vunpack.c.l.b16 %v407
  %v504 = vunpack.c.l.b16 %v408
  %v505 = vunpack.c.l.b16 %v409
  %v506 = vunpack.c.l.b16 %v410
  %v507 = vunpack.c.l.b16 %v411
  %v508 = vunpack.c.l.b16 %v412
  %v509 = vunpack.c.l.b16 %v413
  %v510 = vunpack.c.l.b16 %v414
  %v511 = vunpack.c.l.b16 %v415
  %v512 = vunpack.c.l.b16 %v416
  %v513 = vunpack.c.l.b16 %v417
  %v514 = vunpack.c.l.b16 %v418
  %v515 = vunpack.c.l.b16 %v419
  %v516 = vpack.c.b16 %v469, %v468
  %v517 = vpack.c.b16 %v471, %v470
  %v518 = vpack.c.b16 %v473, %v472
  %v519 = vpack.c.b16 %v475, %v474
  %v520 = vpack.c.b16 %v477, %v476
  %v521 = vpack.c.b16 %v479, %v478
  %v522 = vpack.c.b16 %v481, %v480
  %v523 = vpack.c.b16 %v483, %v482
  %v524 = vpack.c.b16 %v485, %v484
  %v525 = vpack.c.b16 %v487, %v486
  %v526 = vpack.c.b16 %v489, %v488
  %v527 = vpack.c.b16 %v491, %v490
  %v528 = vpack.c.b16 %v493, %v492
  %v529 = vpack.c.b16 %v495, %v494
  %v530 = vpack.c.b16 %v497, %v496
  %v531 = vpack.c.b16 %v499, %v498
  %v532 = vpack.c.b16 %v501, %v500
  %v533 = vpack.c.b16 %v503, %v502
  %v534 = vpack.c.b16 %v505, %v504
  %v535 = vpack.c.b16 %v507, %v506
  %v536 = vpack.c.b16 %v509, %v508
  %v537 = vpack.c.b16 %v511, %v510
  %v538 = vpack.c.b16 %v513, %v512
  %v539 = vpack.c.b16 %v515, %v514
  %564 = vmatprep.subr.bf16.mxu0 0
  %565 = vmatpush1.bf16.msra.mxu0 %v516
  %566 = vmatprep.subr.bf16.mxu0 0
  %567 = vmatpush1.bf16.msra.mxu0 %v517
  %568 = vmatprep.subr.bf16.mxu0 0
  %569 = vmatpush1.bf16.msra.mxu0 %v518
  %570 = vmatprep.subr.bf16.mxu0 0
  %571 = vmatpush1.bf16.msra.mxu0 %v519
  %572 = vmatprep.subr.bf16.mxu0 0
  %573 = vmatpush1.bf16.msra.mxu0 %v520
  %574 = vmatprep.subr.bf16.mxu0 0
  %575 = vmatpush1.bf16.msra.mxu0 %v521
  %576 = vmatprep.subr.bf16.mxu0 0
  %577 = vmatpush1.bf16.msra.mxu0 %v522
  %578 = vmatprep.subr.bf16.mxu0 0
  %579 = vmatpush1.bf16.msra.mxu0 %v523
  %580 = vmatprep.subr.bf16.mxu0 0
  %581 = vmatpush1.bf16.msra.mxu0 %v524
  %582 = vmatprep.subr.bf16.mxu0 0
  %583 = vmatpush1.bf16.msra.mxu0 %v525
  %584 = vmatprep.subr.bf16.mxu0 0
  %585 = vmatpush1.bf16.msra.mxu0 %v526
  %586 = vmatprep.subr.bf16.mxu0 0
  %587 = vmatpush1.bf16.msra.mxu0 %v527
  %588 = vmatprep.subr.bf16.mxu0 0
  %589 = vmatpush1.bf16.msra.mxu0 %v528
  %590 = vmatprep.subr.bf16.mxu0 0
  %591 = vmatpush1.bf16.msra.mxu0 %v529
  %592 = vmatprep.subr.bf16.mxu0 0
  %593 = vmatpush1.bf16.msra.mxu0 %v530
  %594 = vmatprep.subr.bf16.mxu0 0
  %595 = vmatpush1.bf16.msra.mxu0 %v531
  %596 = vmatprep.mubr.bf16.mxu0 %v339
  %597 = vmatmul.mubr.bf16.gmra.mrb[0].mxu0 %v360
  %v598 = vpop.f32.mrb[0].mxu0
  %v599 = vadd.f32 0.0, %v598
  %v600 = vpop.f32.mrb[0].mxu0
  %v601 = vpop.f32.mrb[0].mxu0
  %v602 = vadd.f32 0.0, %v601
  %v603 = vpop.f32.mrb[0].mxu0
  %604 = vmatprep.mubr.bf16.mxu0 %v340
  %605 = vmatmul.mubr.bf16.gmra.mrb[0].mxu0 %v361
  %v606 = vpop.f32.mrb[0].mxu0
  %v607 = vadd.f32 0.0, %v606
  %v608 = vpop.f32.mrb[0].mxu0
  %v609 = vpop.f32.mrb[0].mxu0
  %v610 = vadd.f32 0.0, %v609
  %v611 = vpop.f32.mrb[0].mxu0
  %612 = vdwg.mxu0
  %613 = vmatprep.subr.bf16.mxu0 0
  %614 = vmatpush1.bf16.msra.mxu0 %v532
  %615 = vmatprep.subr.bf16.mxu0 0
  %616 = vmatpush1.bf16.msra.mxu0 %v533
  %617 = vmatprep.subr.bf16.mxu0 0
  %618 = vmatpush1.bf16.msra.mxu0 %v534
  %619 = vmatprep.subr.bf16.mxu0 0
  %620 = vmatpush1.bf16.msra.mxu0 %v535
  %621 = vmatprep.subr.bf16.mxu0 0
  %622 = vmatpush1.bf16.msra.mxu0 %v536
  %623 = vmatprep.subr.bf16.mxu0 0
  %624 = vmatpush1.bf16.msra.mxu0 %v537
  %625 = vmatprep.subr.bf16.mxu0 0
  %626 = vmatpush1.bf16.msra.mxu0 %v538
  %627 = vmatprep.subr.bf16.mxu0 0
  %628 = vmatpush1.bf16.msra.mxu0 %v539
  %629 = vmatprep.subr.bf16.mxu0 0
  %630 = vmatpush1.bf16.msra.mxu0 0
  %631 = vmatprep.subr.bf16.mxu0 0
  %632 = vmatpush1.bf16.msra.mxu0 0
  %633 = vmatprep.subr.bf16.mxu0 0
  %634 = vmatpush1.bf16.msra.mxu0 0
  %635 = vmatprep.subr.bf16.mxu0 0
  %636 = vmatpush1.bf16.msra.mxu0 0
  %637 = vmatprep.subr.bf16.mxu0 0
  %638 = vmatpush1.bf16.msra.mxu0 0
  %639 = vmatprep.subr.bf16.mxu0 0
  %640 = vmatpush1.bf16.msra.mxu0 0
  %641 = vmatprep.subr.bf16.mxu0 0
  %642 = vmatpush1.bf16.msra.mxu0 0
  %643 = vmatprep.subr.bf16.mxu0 0
  %644 = vmatpush1.bf16.msra.mxu0 0
  %645 = vmatprep.mubr.bf16.mxu0 0
  %646 = vmatmul.mubr.bf16.gmra.mrb[0].mxu0 %v370
  %v647 = vpop.f32.mrb[0].mxu0
  %v648 = vadd.f32 %v599, %v647
  %v649 = vpop.f32.mrb[0].mxu0
  %v650 = vpop.f32.mrb[0].mxu0
  %v651 = vadd.f32 %v602, %v650
  %v652 = vpop.f32.mrb[0].mxu0
  %653 = vmatprep.mubr.bf16.mxu0 0
  %654 = vmatmul.mubr.bf16.gmra.mrb[0].mxu0 %v371
  %v655 = vpop.f32.mrb[0].mxu0
  %v656 = vadd.f32 %v607, %v655
  %v657 = vpop.f32.mrb[0].mxu0
  %v658 = vpop.f32.mrb[0].mxu0
  %v659 = vadd.f32 %v610, %v658
  %v660 = vpop.f32.mrb[0].mxu0
  %661 = vdwg.mxu0
  %v662 = vld [vmem:[%s5] sm:$0x1]
  %v664 = vlaneseq
  %v665 = vshrl.u32 %v664, 7
  %v666 = vsub.s32 0, %v665
  %v667 = vrot.slane %v662, %v666
  %v669 = vmul.f32 %v648, %v667
  %v670 = vmul.f32 %v651, %v667
  %v671 = vmul.f32 %v656, %v667
  %v672 = vmul.f32 %v659, %v667
  %v673 = vld [vmem:[%s6] sm:$0x1]
  %v675 = vlaneseq
  %v676 = vshrl.u32 %v675, 7
  %v677 = vsub.s32 0, %v676
  %v678 = vrot.slane %v673, %v677
  %v680 = vadd.f32 %v669, %v678
  %v681 = vadd.f32 %v670, %v678
  %v682 = vadd.f32 %v671, %v678
  %v683 = vadd.f32 %v672, %v678
  %v684 = vadd.f32 %v680, %v328
  %v685 = vadd.f32 %v681, %v330
  %v686 = vadd.f32 %v682, %v332
  %v687 = vadd.f32 %v683, %v334
  %v688 = vmax.f32 %v684, 0.0
  %v689 = vmax.f32 %v685, 0.0
  %v690 = vmax.f32 %v686, 0.0
  %v691 = vmax.f32 %v687, 0.0
  %v692 = vpack.c.bf16 %v689, %v688
  %v693 = vpack.c.bf16 %v691, %v690
  %v696 = vunpack.c.l.b16 %v692
  %v697 = vunpack.c.h.b16 %v692
  %v698 = vunpack.c.l.b16 %v693
  %v699 = vunpack.c.h.b16 %v693
  %v700 = vpack.c.b16 %v696, %v696
  %v701 = vpack.c.b16 %v697, %v697
  %v702 = vpack.c.b16 %v698, %v698
  %v703 = vpack.c.b16 %v699, %v699
  %708 = vst [vmem:[%s7] sm:$0xf] %v700
  %709 = vst [vmem:[%s7 + $0x4] sm:$0xf] %v701
  %710 = vst [vmem:[%s7 + $0x8] sm:$0xf] %v702
  %711 = vst [vmem:[%s7 + $0xc] sm:$0xf] %v703
  // Predicated region
  $region30: #{basic_block_forward.1} parent=0 // pred_check
    _
  $region31: #{basic_block_forward.1} parent=0 // pred_check_branch
    %713 = sbr.rel (0) target = $region33
  $region32: #{basic_block_forward.1} parent=0 // pred_region
    _
  $region33: #{basic_block_forward.1} parent=0 // pred_fallthru
    _
  // Predicated region
  $region34: #{basic_block_forward.1} parent=0 // pred_check
    _
  $region35: #{basic_block_forward.1} parent=0 // pred_check_branch
    %715 = sbr.rel (0) target = $region37
  $region36: #{basic_block_forward.1} parent=0 // pred_region
    _
  $region37: #{basic_block_forward.1} parent=0 // pred_fallthru
    _

</llo_original>
